<compile_context>
chip_gen: v7x
topology: tpu7x:2x2x1
jax: 0.10.0
libtpu: 0.0.40
codegen_flags: <defaults>
</compile_context>

<pallas_src>
import jax
import jax.numpy as jnp
from jax import lax
from jax.experimental import pallas as pl
from jax.experimental.pallas import tpu as pltpu


def _lstm_rul_kernel(x2d_ref, w_ih_t_ref, w_hh_t_ref, b_ref,
                     w1_t_ref, b1_ref, w2_row_ref, b2_ref, out_ref):
    """One batch block of the LSTM recurrence + MLP regressor, all in VMEM.

    x2d_ref:    (T*bb, D)  bf16  time-major input rows for this batch block
    w_ih_t_ref: (D, 4H)    bf16
    w_hh_t_ref: (H, 4H)    bf16
    b_ref:      (1, 4H)    f32   (b_ih + b_hh)
    w1_t_ref:   (H, H)     bf16
    b1_ref:     (1, H)     f32
    w2_row_ref: (1, H)     f32
    b2_ref:     (1,)       f32   scalar in SMEM
    out_ref:    (bb, PACK) f32   lanes [0:H] = features, lane H = prediction
    """
    bb, pack = out_ref.shape
    H = w1_t_ref.shape[0]
    T = x2d_ref.shape[0] // bb

    # Hoisted input projection: one MXU call for all T timesteps of this batch
    # block, bias folded in (bf16 inputs, f32 accumulate).
    gates_x = (jnp.dot(x2d_ref[...], w_ih_t_ref[...],
                       preferred_element_type=jnp.float32)
               + b_ref[...])                                    # (T*bb, 4H) f32

    w_hh_t = w_hh_t_ref[...]                                    # (H, 4H), loaded once

    # ---- t = 0 peeled: h0 = c0 = 0 -> no recurrent matmul, no f*c term.
    g0 = gates_x[0:bb, :]
    sig = jax.nn.sigmoid(g0)                                    # one full-width EUP pass
    i_g = sig[:, 0 * H:1 * H]
    o_g = sig[:, 3 * H:4 * H]
    g_g = jnp.tanh(g0[:, 2 * H:3 * H])                          # tanh only on g quadrant
    c = i_g * g_g
    h = o_g * jnp.tanh(c)

    # ---- Remaining serial recurrence, fully unrolled; h/c carried in registers.
    # (For large T use lax.fori_loop(..., unroll=2..4) to bound live ranges.)
    for t in range(1, T):
        g_x = gates_x[t * bb:(t + 1) * bb, :]                   # static, sublane-aligned
        gates = g_x + jnp.dot(h.astype(jnp.bfloat16), w_hh_t,
                              preferred_element_type=jnp.float32)
        sig = jax.nn.sigmoid(gates)
        i_g = sig[:, 0 * H:1 * H]
        f_g = sig[:, 1 * H:2 * H]
        o_g = sig[:, 3 * H:4 * H]
        g_g = jnp.tanh(gates[:, 2 * H:3 * H])
        c = f_g * c + i_g * g_g
        h = o_g * jnp.tanh(c)

    # ---- Regressor: Linear -> ReLU -> (Dropout = identity, eval) -> Linear.
    # TODO(synk): nn.Dropout in the regressor is identity here (eval-mode semantics).
    hid = jnp.maximum(
        jnp.dot(h.astype(jnp.bfloat16), w1_t_ref[...],
                preferred_element_type=jnp.float32) + b1_ref[...], 0.0)

    # Final Linear(H, 1): VPU multiply + lane reduction (XLU slot is idle here)
    # instead of a badly shaped N=1 MXU matmul.
    pred = (jnp.sum(hid * w2_row_ref[...], axis=-1, keepdims=True)
            + b2_ref[0])                                        # (bb, 1)

    # Lane-dense writeback: single unmasked full-width store (features in
    # lanes [0:H], prediction replicated from lane H onward; wrapper unpacks).
    out_ref[...] = jnp.concatenate(
        [h, jnp.broadcast_to(pred, (bb, pack - H))], axis=-1)


def lstm_rul_forward(src, params, *, batch_block=8):
    """src: (B, T, D) float32 (PyTorch batch_first). Returns (pred (B,), feat (B, H))."""
    B, T, D = src.shape
    H = params["w_hh"].shape[1]                                  # w_hh: (4H, H)
    bb = min(batch_block, B)
    assert B % bb == 0, "batch must be divisible by the batch block"
    nb = B // bb
    pack = max(128, ((H + 1 + 127) // 128) * 128)                # lane-dense output width

    # Time-major within each batch block so per-step slices in the kernel are
    # free sublane-aligned row blocks. (At scale the producer should emit this
    # layout directly to avoid the extra HBM round trip of this transpose.)
    x2d = (src.reshape(nb, bb, T, D)
              .transpose(0, 2, 1, 3)                             # (nb, T, bb, D)
              .reshape(nb * T * bb, D)
              .astype(jnp.bfloat16))

    w_ih_t = params["w_ih"].T.astype(jnp.bfloat16)               # (D, 4H)
    w_hh_t = params["w_hh"].T.astype(jnp.bfloat16)               # (H, 4H)
    b_gate = (params["b_ih"] + params["b_hh"]).reshape(1, 4 * H).astype(jnp.float32)
    w1_t = params["w1"].T.astype(jnp.bfloat16)                   # (H, H)
    b1 = params["b1"].reshape(1, H).astype(jnp.float32)
    w2_row = params["w2"].reshape(1, H).astype(jnp.float32)      # used on VPU, keep f32
    b2 = params["b2"].reshape(1,).astype(jnp.float32)            # scalar -> SMEM

    out = pl.pallas_call(
        _lstm_rul_kernel,
        out_shape=jax.ShapeDtypeStruct((B, pack), jnp.float32),
        grid=(nb,),
        in_specs=[
            pl.BlockSpec((T * bb, D), lambda i: (i, 0)),         # per-block input rows
            pl.BlockSpec((D, 4 * H), lambda i: (0, 0)),
            pl.BlockSpec((H, 4 * H), lambda i: (0, 0)),
            pl.BlockSpec((1, 4 * H), lambda i: (0, 0)),
            pl.BlockSpec((H, H), lambda i: (0, 0)),
            pl.BlockSpec((1, H), lambda i: (0, 0)),
            pl.BlockSpec((1, H), lambda i: (0, 0)),
            pl.BlockSpec(memory_space=pltpu.MemorySpace.SMEM),   # b2 scalar
        ],
        out_specs=pl.BlockSpec((bb, pack), lambda i: (i, 0)),
        compiler_params=pltpu.CompilerParams(
            dimension_semantics=("parallel",)),                  # megacore sharding (v7x)
    )(x2d, w_ih_t, w_hh_t, b_gate, w1_t, b1, w2_row, b2)

    feat = out[:, :H]
    pred = out[:, H]
    return pred, feat          # matches (predictions.squeeze(), features)


def _ref_forward(src, p):
    """Pure-JAX f32 reference matching PyTorch nn.LSTM (1 layer) + regressor (eval)."""
    B, T, D = src.shape
    H = p["w_hh"].shape[1]
    h = jnp.zeros((B, H), jnp.float32)
    c = jnp.zeros((B, H), jnp.float32)
    for t in range(T):
        gates = (src[:, t, :] @ p["w_ih"].T + p["b_ih"]
                 + h @ p["w_hh"].T + p["b_hh"])
        i, f, g, o = jnp.split(gates, 4, axis=1)
        i, f, o = jax.nn.sigmoid(i), jax.nn.sigmoid(f), jax.nn.sigmoid(o)
        g = jnp.tanh(g)
        c = f * c + i * g
        h = o * jnp.tanh(c)
    feat = h
    hid = jnp.maximum(feat @ p["w1"].T + p["b1"], 0.0)
    pred = hid @ p["w2"].T + p["b2"]
    return pred.squeeze(), feat


def _init_params(key, input_dim, hidden_dim):
    """Deterministic init mimicking PyTorch's U(-1/sqrt(H), 1/sqrt(H))."""
    ks = jax.random.split(key, 8)
    s = 1.0 / jnp.sqrt(hidden_dim)

    def u(k, shape):
        return jax.random.uniform(k, shape, jnp.float32, -s, s)

    return {
        "w_ih": u(ks[0], (4 * hidden_dim, input_dim)),
        "w_hh": u(ks[1], (4 * hidden_dim, hidden_dim)),
        "b_ih": u(ks[2], (4 * hidden_dim,)),
        "b_hh": u(ks[3], (4 * hidden_dim,)),
        "w1":   u(ks[4], (hidden_dim, hidden_dim)),   # regressor Linear(H, H)
        "b1":   u(ks[5], (hidden_dim,)),
        "w2":   u(ks[6], (1, hidden_dim)),            # regressor Linear(H, 1)
        "b2":   u(ks[7], (1,)),
    }


if __name__ == "__main__":
    B, T, D, H = 16, 8, 16, 32      # batch, seq, input_dim, hidden_dim (2 grid points)

    key = jax.random.PRNGKey(0)
    k_src, k_par = jax.random.split(key)
    src = jax.random.normal(k_src, (B, T, D), jnp.float32)
    params = _init_params(k_par, D, H)

    pred, feat = lstm_rul_forward(src, params)
    pred = jax.block_until_ready(pred)
    feat = jax.block_until_ready(feat)

    ref_pred, ref_feat = _ref_forward(src, params)
    assert pred.shape == (B,) and feat.shape == (B, H)
    # bf16 MXU inputs with f32 accumulate -> loose (but meaningful) tolerance.
    assert jnp.allclose(pred, ref_pred, atol=2e-2, rtol=2e-2)
    assert jnp.allclose(feat, ref_feat, atol=2e-2, rtol=2e-2)

    print("KERNEL_OK")
</pallas_src>

<mosaic_0001>
module attributes {stable_mosaic.version = 11 : i64} {
  func.func @_lstm_rul_kernel(%arg0: i32, %arg1: memref<64x16xbf16, #tpu.memory_space<vmem>>, %arg2: memref<16x128xbf16, #tpu.memory_space<vmem>>, %arg3: memref<32x128xbf16, #tpu.memory_space<vmem>>, %arg4: memref<1x128xf32, #tpu.memory_space<vmem>>, %arg5: memref<32x32xbf16, #tpu.memory_space<vmem>>, %arg6: memref<1x32xf32, #tpu.memory_space<vmem>>, %arg7: memref<1x32xf32, #tpu.memory_space<vmem>>, %arg8: memref<1xf32, #tpu.memory_space<smem>>, %arg9: memref<8x128xf32, #tpu.memory_space<vmem>>) attributes {dimension_semantics = [#tpu.dimension_semantics<parallel>], iteration_bounds = array<i64: 2>, scalar_prefetch = 0 : i64, scratch_operands = 0 : i64, tpu.core_type = #tpu.core_type<tc>, window_params = [{transform_indices = @transform_0, window_bounds = array<i64: 64, 16>}, {pipeline_mode = #tpu.pipeline_mode<synchronous>, transform_indices = @transform_1, window_bounds = array<i64: 16, 128>}, {pipeline_mode = #tpu.pipeline_mode<synchronous>, transform_indices = @transform_2, window_bounds = array<i64: 32, 128>}, {pipeline_mode = #tpu.pipeline_mode<synchronous>, transform_indices = @transform_3, window_bounds = array<i64: 1, 128>}, {pipeline_mode = #tpu.pipeline_mode<synchronous>, transform_indices = @transform_4, window_bounds = array<i64: 32, 32>}, {pipeline_mode = #tpu.pipeline_mode<synchronous>, transform_indices = @transform_5, window_bounds = array<i64: 1, 32>}, {pipeline_mode = #tpu.pipeline_mode<synchronous>, transform_indices = @transform_6, window_bounds = array<i64: 1, 32>}, {transform_indices = @transform_7, window_bounds = array<i64: 1>}, {transform_indices = @transform_8, window_bounds = array<i64: 8, 128>}]} {
    %c0 = arith.constant 0 : index
    %c0_0 = arith.constant 0 : index
    %0 = vector.load %arg1[%c0, %c0_0] : memref<64x16xbf16, #tpu.memory_space<vmem>>, vector<64x16xbf16>
    %c0_1 = arith.constant 0 : index
    %c0_2 = arith.constant 0 : index
    %1 = vector.load %arg2[%c0_1, %c0_2] : memref<16x128xbf16, #tpu.memory_space<vmem>>, vector<16x128xbf16>
    %cst = arith.constant dense<0.000000e+00> : vector<64x128xf32>
    %2 = tpu.matmul %0, %1, %cst {dimension_numbers = #tpu.dot_dimension_numbers<[1], [0], [0], [1], [0, 0, 1, 1], [], []>} : vector<64x16xbf16>, vector<16x128xbf16>, vector<64x128xf32> -> vector<64x128xf32>
    %c0_3 = arith.constant 0 : index
    %c0_4 = arith.constant 0 : index
    %3 = vector.load %arg4[%c0_3, %c0_4] : memref<1x128xf32, #tpu.memory_space<vmem>>, vector<1x128xf32>
    %4 = vector.broadcast %3 : vector<1x128xf32> to vector<64x128xf32>
    %5 = arith.addf %2, %4 : vector<64x128xf32>
    %c0_5 = arith.constant 0 : index
    %c0_6 = arith.constant 0 : index
    %6 = vector.load %arg3[%c0_5, %c0_6] : memref<32x128xbf16, #tpu.memory_space<vmem>>, vector<32x128xbf16>
    %7 = vector.extract_strided_slice %5 {offsets = [0, 0], sizes = [8, 128], strides = [1, 1]} : vector<64x128xf32> to vector<8x128xf32>
    %8 = arith.negf %7 : vector<8x128xf32>
    %9 = math.exp %8 : vector<8x128xf32>
    %cst_7 = arith.constant 1.000000e+00 : f32
    %10 = vector.broadcast %cst_7 : f32 to vector<8x128xf32>
    %11 = arith.addf %10, %9 : vector<8x128xf32>
    %12 = arith.divf %10, %11 : vector<8x128xf32>
    %13 = vector.extract_strided_slice %12 {offsets = [0, 0], sizes = [8, 32], strides = [1, 1]} : vector<8x128xf32> to vector<8x32xf32>
    %14 = vector.extract_strided_slice %12 {offsets = [0, 96], sizes = [8, 32], strides = [1, 1]} : vector<8x128xf32> to vector<8x32xf32>
    %15 = vector.extract_strided_slice %7 {offsets = [0, 64], sizes = [8, 32], strides = [1, 1]} : vector<8x128xf32> to vector<8x32xf32>
    %16 = math.tanh %15 : vector<8x32xf32>
    %17 = arith.mulf %13, %16 : vector<8x32xf32>
    %18 = math.tanh %17 : vector<8x32xf32>
    %19 = arith.mulf %14, %18 : vector<8x32xf32>
    %20 = vector.extract_strided_slice %5 {offsets = [8, 0], sizes = [8, 128], strides = [1, 1]} : vector<64x128xf32> to vector<8x128xf32>
    %21 = arith.truncf %19 : vector<8x32xf32> to vector<8x32xbf16>
    %cst_8 = arith.constant dense<0.000000e+00> : vector<8x128xf32>
    %22 = tpu.matmul %21, %6, %cst_8 {dimension_numbers = #tpu.dot_dimension_numbers<[1], [0], [0], [1], [0, 0, 1, 1], [], []>} : vector<8x32xbf16>, vector<32x128xbf16>, vector<8x128xf32> -> vector<8x128xf32>
    %23 = arith.addf %20, %22 : vector<8x128xf32>
    %24 = arith.negf %23 : vector<8x128xf32>
    %25 = math.exp %24 : vector<8x128xf32>
    %cst_9 = arith.constant 1.000000e+00 : f32
    %26 = vector.broadcast %cst_9 : f32 to vector<8x128xf32>
    %27 = arith.addf %26, %25 : vector<8x128xf32>
    %28 = arith.divf %26, %27 : vector<8x128xf32>
    %29 = vector.extract_strided_slice %28 {offsets = [0, 0], sizes = [8, 32], strides = [1, 1]} : vector<8x128xf32> to vector<8x32xf32>
    %30 = vector.extract_strided_slice %28 {offsets = [0, 32], sizes = [8, 32], strides = [1, 1]} : vector<8x128xf32> to vector<8x32xf32>
    %31 = vector.extract_strided_slice %28 {offsets = [0, 96], sizes = [8, 32], strides = [1, 1]} : vector<8x128xf32> to vector<8x32xf32>
    %32 = vector.extract_strided_slice %23 {offsets = [0, 64], sizes = [8, 32], strides = [1, 1]} : vector<8x128xf32> to vector<8x32xf32>
    %33 = math.tanh %32 : vector<8x32xf32>
    %34 = arith.mulf %30, %17 : vector<8x32xf32>
    %35 = arith.mulf %29, %33 : vector<8x32xf32>
    %36 = arith.addf %34, %35 : vector<8x32xf32>
    %37 = math.tanh %36 : vector<8x32xf32>
    %38 = arith.mulf %31, %37 : vector<8x32xf32>
    %39 = vector.extract_strided_slice %5 {offsets = [16, 0], sizes = [8, 128], strides = [1, 1]} : vector<64x128xf32> to vector<8x128xf32>
    %40 = arith.truncf %38 : vector<8x32xf32> to vector<8x32xbf16>
    %cst_10 = arith.constant dense<0.000000e+00> : vector<8x128xf32>
    %41 = tpu.matmul %40, %6, %cst_10 {dimension_numbers = #tpu.dot_dimension_numbers<[1], [0], [0], [1], [0, 0, 1, 1], [], []>} : vector<8x32xbf16>, vector<32x128xbf16>, vector<8x128xf32> -> vector<8x128xf32>
    %42 = arith.addf %39, %41 : vector<8x128xf32>
    %43 = arith.negf %42 : vector<8x128xf32>
    %44 = math.exp %43 : vector<8x128xf32>
    %cst_11 = arith.constant 1.000000e+00 : f32
    %45 = vector.broadcast %cst_11 : f32 to vector<8x128xf32>
    %46 = arith.addf %45, %44 : vector<8x128xf32>
    %47 = arith.divf %45, %46 : vector<8x128xf32>
    %48 = vector.extract_strided_slice %47 {offsets = [0, 0], sizes = [8, 32], strides = [1, 1]} : vector<8x128xf32> to vector<8x32xf32>
    %49 = vector.extract_strided_slice %47 {offsets = [0, 32], sizes = [8, 32], strides = [1, 1]} : vector<8x128xf32> to vector<8x32xf32>
    %50 = vector.extract_strided_slice %47 {offsets = [0, 96], sizes = [8, 32], strides = [1, 1]} : vector<8x128xf32> to vector<8x32xf32>
    %51 = vector.extract_strided_slice %42 {offsets = [0, 64], sizes = [8, 32], strides = [1, 1]} : vector<8x128xf32> to vector<8x32xf32>
    %52 = math.tanh %51 : vector<8x32xf32>
    %53 = arith.mulf %49, %36 : vector<8x32xf32>
    %54 = arith.mulf %48, %52 : vector<8x32xf32>
    %55 = arith.addf %53, %54 : vector<8x32xf32>
    %56 = math.tanh %55 : vector<8x32xf32>
    %57 = arith.mulf %50, %56 : vector<8x32xf32>
    %58 = vector.extract_strided_slice %5 {offsets = [24, 0], sizes = [8, 128], strides = [1, 1]} : vector<64x128xf32> to vector<8x128xf32>
    %59 = arith.truncf %57 : vector<8x32xf32> to vector<8x32xbf16>
    %cst_12 = arith.constant dense<0.000000e+00> : vector<8x128xf32>
    %60 = tpu.matmul %59, %6, %cst_12 {dimension_numbers = #tpu.dot_dimension_numbers<[1], [0], [0], [1], [0, 0, 1, 1], [], []>} : vector<8x32xbf16>, vector<32x128xbf16>, vector<8x128xf32> -> vector<8x128xf32>
    %61 = arith.addf %58, %60 : vector<8x128xf32>
    %62 = arith.negf %61 : vector<8x128xf32>
    %63 = math.exp %62 : vector<8x128xf32>
    %cst_13 = arith.constant 1.000000e+00 : f32
    %64 = vector.broadcast %cst_13 : f32 to vector<8x128xf32>
    %65 = arith.addf %64, %63 : vector<8x128xf32>
    %66 = arith.divf %64, %65 : vector<8x128xf32>
    %67 = vector.extract_strided_slice %66 {offsets = [0, 0], sizes = [8, 32], strides = [1, 1]} : vector<8x128xf32> to vector<8x32xf32>
    %68 = vector.extract_strided_slice %66 {offsets = [0, 32], sizes = [8, 32], strides = [1, 1]} : vector<8x128xf32> to vector<8x32xf32>
    %69 = vector.extract_strided_slice %66 {offsets = [0, 96], sizes = [8, 32], strides = [1, 1]} : vector<8x128xf32> to vector<8x32xf32>
    %70 = vector.extract_strided_slice %61 {offsets = [0, 64], sizes = [8, 32], strides = [1, 1]} : vector<8x128xf32> to vector<8x32xf32>
    %71 = math.tanh %70 : vector<8x32xf32>
    %72 = arith.mulf %68, %55 : vector<8x32xf32>
    %73 = arith.mulf %67, %71 : vector<8x32xf32>
    %74 = arith.addf %72, %73 : vector<8x32xf32>
    %75 = math.tanh %74 : vector<8x32xf32>
    %76 = arith.mulf %69, %75 : vector<8x32xf32>
    %77 = vector.extract_strided_slice %5 {offsets = [32, 0], sizes = [8, 128], strides = [1, 1]} : vector<64x128xf32> to vector<8x128xf32>
    %78 = arith.truncf %76 : vector<8x32xf32> to vector<8x32xbf16>
    %cst_14 = arith.constant dense<0.000000e+00> : vector<8x128xf32>
    %79 = tpu.matmul %78, %6, %cst_14 {dimension_numbers = #tpu.dot_dimension_numbers<[1], [0], [0], [1], [0, 0, 1, 1], [], []>} : vector<8x32xbf16>, vector<32x128xbf16>, vector<8x128xf32> -> vector<8x128xf32>
    %80 = arith.addf %77, %79 : vector<8x128xf32>
    %81 = arith.negf %80 : vector<8x128xf32>
    %82 = math.exp %81 : vector<8x128xf32>
    %cst_15 = arith.constant 1.000000e+00 : f32
    %83 = vector.broadcast %cst_15 : f32 to vector<8x128xf32>
    %84 = arith.addf %83, %82 : vector<8x128xf32>
    %85 = arith.divf %83, %84 : vector<8x128xf32>
    %86 = vector.extract_strided_slice %85 {offsets = [0, 0], sizes = [8, 32], strides = [1, 1]} : vector<8x128xf32> to vector<8x32xf32>
    %87 = vector.extract_strided_slice %85 {offsets = [0, 32], sizes = [8, 32], strides = [1, 1]} : vector<8x128xf32> to vector<8x32xf32>
    %88 = vector.extract_strided_slice %85 {offsets = [0, 96], sizes = [8, 32], strides = [1, 1]} : vector<8x128xf32> to vector<8x32xf32>
    %89 = vector.extract_strided_slice %80 {offsets = [0, 64], sizes = [8, 32], strides = [1, 1]} : vector<8x128xf32> to vector<8x32xf32>
    %90 = math.tanh %89 : vector<8x32xf32>
    %91 = arith.mulf %87, %74 : vector<8x32xf32>
    %92 = arith.mulf %86, %90 : vector<8x32xf32>
    %93 = arith.addf %91, %92 : vector<8x32xf32>
    %94 = math.tanh %93 : vector<8x32xf32>
    %95 = arith.mulf %88, %94 : vector<8x32xf32>
    %96 = vector.extract_strided_slice %5 {offsets = [40, 0], sizes = [8, 128], strides = [1, 1]} : vector<64x128xf32> to vector<8x128xf32>
    %97 = arith.truncf %95 : vector<8x32xf32> to vector<8x32xbf16>
    %cst_16 = arith.constant dense<0.000000e+00> : vector<8x128xf32>
    %98 = tpu.matmul %97, %6, %cst_16 {dimension_numbers = #tpu.dot_dimension_numbers<[1], [0], [0], [1], [0, 0, 1, 1], [], []>} : vector<8x32xbf16>, vector<32x128xbf16>, vector<8x128xf32> -> vector<8x128xf32>
    %99 = arith.addf %96, %98 : vector<8x128xf32>
    %100 = arith.negf %99 : vector<8x128xf32>
    %101 = math.exp %100 : vector<8x128xf32>
    %cst_17 = arith.constant 1.000000e+00 : f32
    %102 = vector.broadcast %cst_17 : f32 to vector<8x128xf32>
    %103 = arith.addf %102, %101 : vector<8x128xf32>
    %104 = arith.divf %102, %103 : vector<8x128xf32>
    %105 = vector.extract_strided_slice %104 {offsets = [0, 0], sizes = [8, 32], strides = [1, 1]} : vector<8x128xf32> to vector<8x32xf32>
    %106 = vector.extract_strided_slice %104 {offsets = [0, 32], sizes = [8, 32], strides = [1, 1]} : vector<8x128xf32> to vector<8x32xf32>
    %107 = vector.extract_strided_slice %104 {offsets = [0, 96], sizes = [8, 32], strides = [1, 1]} : vector<8x128xf32> to vector<8x32xf32>
    %108 = vector.extract_strided_slice %99 {offsets = [0, 64], sizes = [8, 32], strides = [1, 1]} : vector<8x128xf32> to vector<8x32xf32>
    %109 = math.tanh %108 : vector<8x32xf32>
    %110 = arith.mulf %106, %93 : vector<8x32xf32>
    %111 = arith.mulf %105, %109 : vector<8x32xf32>
    %112 = arith.addf %110, %111 : vector<8x32xf32>
    %113 = math.tanh %112 : vector<8x32xf32>
    %114 = arith.mulf %107, %113 : vector<8x32xf32>
    %115 = vector.extract_strided_slice %5 {offsets = [48, 0], sizes = [8, 128], strides = [1, 1]} : vector<64x128xf32> to vector<8x128xf32>
    %116 = arith.truncf %114 : vector<8x32xf32> to vector<8x32xbf16>
    %cst_18 = arith.constant dense<0.000000e+00> : vector<8x128xf32>
    %117 = tpu.matmul %116, %6, %cst_18 {dimension_numbers = #tpu.dot_dimension_numbers<[1], [0], [0], [1], [0, 0, 1, 1], [], []>} : vector<8x32xbf16>, vector<32x128xbf16>, vector<8x128xf32> -> vector<8x128xf32>
    %118 = arith.addf %115, %117 : vector<8x128xf32>
    %119 = arith.negf %118 : vector<8x128xf32>
    %120 = math.exp %119 : vector<8x128xf32>
    %cst_19 = arith.constant 1.000000e+00 : f32
    %121 = vector.broadcast %cst_19 : f32 to vector<8x128xf32>
    %122 = arith.addf %121, %120 : vector<8x128xf32>
    %123 = arith.divf %121, %122 : vector<8x128xf32>
    %124 = vector.extract_strided_slice %123 {offsets = [0, 0], sizes = [8, 32], strides = [1, 1]} : vector<8x128xf32> to vector<8x32xf32>
    %125 = vector.extract_strided_slice %123 {offsets = [0, 32], sizes = [8, 32], strides = [1, 1]} : vector<8x128xf32> to vector<8x32xf32>
    %126 = vector.extract_strided_slice %123 {offsets = [0, 96], sizes = [8, 32], strides = [1, 1]} : vector<8x128xf32> to vector<8x32xf32>
    %127 = vector.extract_strided_slice %118 {offsets = [0, 64], sizes = [8, 32], strides = [1, 1]} : vector<8x128xf32> to vector<8x32xf32>
    %128 = math.tanh %127 : vector<8x32xf32>
    %129 = arith.mulf %125, %112 : vector<8x32xf32>
    %130 = arith.mulf %124, %128 : vector<8x32xf32>
    %131 = arith.addf %129, %130 : vector<8x32xf32>
    %132 = math.tanh %131 : vector<8x32xf32>
    %133 = arith.mulf %126, %132 : vector<8x32xf32>
    %134 = vector.extract_strided_slice %5 {offsets = [56, 0], sizes = [8, 128], strides = [1, 1]} : vector<64x128xf32> to vector<8x128xf32>
    %135 = arith.truncf %133 : vector<8x32xf32> to vector<8x32xbf16>
    %cst_20 = arith.constant dense<0.000000e+00> : vector<8x128xf32>
    %136 = tpu.matmul %135, %6, %cst_20 {dimension_numbers = #tpu.dot_dimension_numbers<[1], [0], [0], [1], [0, 0, 1, 1], [], []>} : vector<8x32xbf16>, vector<32x128xbf16>, vector<8x128xf32> -> vector<8x128xf32>
    %137 = arith.addf %134, %136 : vector<8x128xf32>
    %138 = arith.negf %137 : vector<8x128xf32>
    %139 = math.exp %138 : vector<8x128xf32>
    %cst_21 = arith.constant 1.000000e+00 : f32
    %140 = vector.broadcast %cst_21 : f32 to vector<8x128xf32>
    %141 = arith.addf %140, %139 : vector<8x128xf32>
    %142 = arith.divf %140, %141 : vector<8x128xf32>
    %143 = vector.extract_strided_slice %142 {offsets = [0, 0], sizes = [8, 32], strides = [1, 1]} : vector<8x128xf32> to vector<8x32xf32>
    %144 = vector.extract_strided_slice %142 {offsets = [0, 32], sizes = [8, 32], strides = [1, 1]} : vector<8x128xf32> to vector<8x32xf32>
    %145 = vector.extract_strided_slice %142 {offsets = [0, 96], sizes = [8, 32], strides = [1, 1]} : vector<8x128xf32> to vector<8x32xf32>
    %146 = vector.extract_strided_slice %137 {offsets = [0, 64], sizes = [8, 32], strides = [1, 1]} : vector<8x128xf32> to vector<8x32xf32>
    %147 = math.tanh %146 : vector<8x32xf32>
    %148 = arith.mulf %144, %131 : vector<8x32xf32>
    %149 = arith.mulf %143, %147 : vector<8x32xf32>
    %150 = arith.addf %148, %149 : vector<8x32xf32>
    %151 = math.tanh %150 : vector<8x32xf32>
    %152 = arith.mulf %145, %151 : vector<8x32xf32>
    %153 = arith.truncf %152 : vector<8x32xf32> to vector<8x32xbf16>
    %c0_22 = arith.constant 0 : index
    %c0_23 = arith.constant 0 : index
    %154 = vector.load %arg5[%c0_22, %c0_23] : memref<32x32xbf16, #tpu.memory_space<vmem>>, vector<32x32xbf16>
    %cst_24 = arith.constant dense<0.000000e+00> : vector<8x32xf32>
    %155 = tpu.matmul %153, %154, %cst_24 {dimension_numbers = #tpu.dot_dimension_numbers<[1], [0], [0], [1], [0, 0, 1, 1], [], []>} : vector<8x32xbf16>, vector<32x32xbf16>, vector<8x32xf32> -> vector<8x32xf32>
    %c0_25 = arith.constant 0 : index
    %c0_26 = arith.constant 0 : index
    %156 = vector.load %arg6[%c0_25, %c0_26] : memref<1x32xf32, #tpu.memory_space<vmem>>, vector<1x32xf32>
    %157 = vector.broadcast %156 : vector<1x32xf32> to vector<8x32xf32>
    %158 = arith.addf %155, %157 : vector<8x32xf32>
    %cst_27 = arith.constant 0.000000e+00 : f32
    %159 = vector.broadcast %cst_27 : f32 to vector<8x32xf32>
    %160 = arith.maximumf %158, %159 : vector<8x32xf32>
    %c0_28 = arith.constant 0 : index
    %c0_29 = arith.constant 0 : index
    %161 = vector.load %arg7[%c0_28, %c0_29] : memref<1x32xf32, #tpu.memory_space<vmem>>, vector<1x32xf32>
    %162 = vector.broadcast %161 : vector<1x32xf32> to vector<8x32xf32>
    %163 = arith.mulf %160, %162 : vector<8x32xf32>
    %cst_30 = arith.constant dense<0.000000e+00> : vector<8xf32>
    %164 = vector.multi_reduction <add>, %163, %cst_30 [1] : vector<8x32xf32> to vector<8xf32>
    %165 = vector.shape_cast %164 : vector<8xf32> to vector<8x1xf32>
    %c0_31 = arith.constant 0 : index
    %166 = memref.load %arg8[%c0_31] : memref<1xf32, #tpu.memory_space<smem>>
    %167 = vector.broadcast %166 : f32 to vector<8x1xf32>
    %168 = arith.addf %165, %167 : vector<8x1xf32>
    %169 = vector.shape_cast %168 : vector<8x1xf32> to vector<8x1xf32>
    %170 = vector.broadcast %169 : vector<8x1xf32> to vector<8x96xf32>
    %171 = tpu.concatenate %152, %170 in 1 : vector<8x32xf32>, vector<8x96xf32> -> vector<8x128xf32>
    %c0_32 = arith.constant 0 : index
    %c0_33 = arith.constant 0 : index
    %172 = vector.load %arg9[%c0_32, %c0_33] : memref<8x128xf32, #tpu.memory_space<vmem>>, vector<8x128xf32>
    tpu.vector_store %arg9[%c0_32, %c0_33], %171 {strides = array<i32>} : memref<8x128xf32, #tpu.memory_space<vmem>>, vector<8x128xf32>,
    return
  }
  func.func @transform_0(%arg0: i32) -> (i32, i32) {
    %c0_i32 = arith.constant 0 : i32
    %c0_i32_0 = arith.constant 0 : i32
    return %arg0, %c0_i32 : i32, i32
  }
  func.func @transform_1(%arg0: i32) -> (i32, i32) {
    %c0_i32 = arith.constant 0 : i32
    %c0_i32_0 = arith.constant 0 : i32
    %c0_i32_1 = arith.constant 0 : i32
    return %c0_i32, %c0_i32_0 : i32, i32
  }
  func.func @transform_2(%arg0: i32) -> (i32, i32) {
    %c0_i32 = arith.constant 0 : i32
    %c0_i32_0 = arith.constant 0 : i32
    %c0_i32_1 = arith.constant 0 : i32
    return %c0_i32, %c0_i32_0 : i32, i32
  }
  func.func @transform_3(%arg0: i32) -> (i32, i32) {
    %c0_i32 = arith.constant 0 : i32
    %c0_i32_0 = arith.constant 0 : i32
    %c0_i32_1 = arith.constant 0 : i32
    return %c0_i32, %c0_i32_0 : i32, i32
  }
  func.func @transform_4(%arg0: i32) -> (i32, i32) {
    %c0_i32 = arith.constant 0 : i32
    %c0_i32_0 = arith.constant 0 : i32
    %c0_i32_1 = arith.constant 0 : i32
    return %c0_i32, %c0_i32_0 : i32, i32
  }
  func.func @transform_5(%arg0: i32) -> (i32, i32) {
    %c0_i32 = arith.constant 0 : i32
    %c0_i32_0 = arith.constant 0 : i32
    %c0_i32_1 = arith.constant 0 : i32
    return %c0_i32, %c0_i32_0 : i32, i32
  }
  func.func @transform_6(%arg0: i32) -> (i32, i32) {
    %c0_i32 = arith.constant 0 : i32
    %c0_i32_0 = arith.constant 0 : i32
    %c0_i32_1 = arith.constant 0 : i32
    return %c0_i32, %c0_i32_0 : i32, i32
  }
  func.func @transform_7(%arg0: i32) -> i32 {
    %c0_i32 = arith.constant 0 : i32
    %c0_i32_0 = arith.constant 0 : i32
    return %c0_i32 : i32
  }
  func.func @transform_8(%arg0: i32) -> (i32, i32) {
    %c0_i32 = arith.constant 0 : i32
    %c0_i32_0 = arith.constant 0 : i32
    return %arg0, %c0_i32 : i32, i32
  }
}

</mosaic_0001>

<llo_original>
// kernel: tpu_custom_call.1
$region0: #{tpu_custom_call.1}
  #allocation0 [shape = 'u32[]', space=smem, size = 0x4, offset = 0x4, fixed_abs, tag = 'smem constant byte address 0x4 - core index']
  #allocation1 [shape = 'u32[144,128]{1,0:T(1,128)}', space=vmem, size = 0x12000, scoped, tag = 'internal scratch']
  #allocation2 [shape = 'f32[1]{0:T(128)S(6)}', space=smem, size = 0x200, scoped, tag = 'scoped memory for tpu_custom_call.1']
  %s0 = inlined_call_operand.vmem [shape: bf16[128,16], index: 0, kind: input, shape index: {}]
  %s1 = inlined_call_operand.vmem [shape: bf16[16,128], index: 1, kind: input, shape index: {}]
  %s2 = inlined_call_operand.vmem [shape: bf16[32,128], index: 2, kind: input, shape index: {}]
  %s3 = inlined_call_operand.vmem [shape: f32[1,128], index: 3, kind: input, shape index: {}]
  %s4 = inlined_call_operand.vmem [shape: bf16[32,32], index: 4, kind: input, shape index: {}]
  %s5 = inlined_call_operand.vmem [shape: f32[1,32], index: 5, kind: input, shape index: {}]
  %s6 = inlined_call_operand.vmem [shape: f32[1,32], index: 6, kind: input, shape index: {}]
  %s7 = inlined_call_operand.<no memory space> [shape: f32[1], index: 7, kind: input, shape index: {}]
  %s8 = inlined_call_operand.hbm [shape: f32[16,128], index: 8, kind: output, shape index: {}]
  %s9 = sld [smem:[#allocation0]]
  $region65: #{tpu_custom_call.1} parent=0
    _
  %s11 = ssub.s32 1, %s9
  %s12 = scalar_select 0, %s11, %s9
  %13 = sst [smem:[#allocation2]] %s7
  $region1: #{tpu_custom_call.1} parent=0
    #allocation3 [shape = 'u8[8192]{0}', space=vmem, size = 0x2000, scoped, tag = 'output window, operand 0']
    #allocation4 [shape = 's32[2]{0}', space=sflag, size = 0x8, scoped, tag = 'scoped memory for tpu_custom_call.1']
    %14 = vsyncpa [#allocation4], 0
    %s15 = scalar_lea.sflag [#allocation4], 1
    %16 = vsyncpa %s15, 0
    loop: start=0, step=1, limit=4
    $region2: #{tpu_custom_call.1} parent=1 // loop_pre_header
      _
    $region3: #{tpu_custom_call.1} parent=1 // loop_header
      %s18 = sphi 0, %s22
      %p19 = scmp.ge.s32.totalorder %s18, 4
      %s28 = sphi 0, %s30
      %s31 = sphi 0, %s28
      %s32 = sphi 0, %s31
      %s48 = sphi 0, %s32
      %s52 = sphi 0, %s52
      %s54 = sphi 0, %s52
      %s55 = sphi 0, %s54
      %s69 = sphi 0, %s55
      %s73 = sphi 0, %s73
      %s75 = sphi 0, %s73
      %s76 = sphi 0, %s75
      %s90 = sphi 0, %s76
      %s94 = sphi 0, %s94
      %s96 = sphi 0, %s94
      %s97 = sphi 0, %s96
      %s111 = sphi 0, %s97
      %s115 = sphi 0, %s115
      %s117 = sphi 0, %s115
      %s118 = sphi 0, %s117
      %s132 = sphi 0, %s118
      %s136 = sphi 0, %s136
      %s138 = sphi 0, %s136
      %s139 = sphi 0, %s138
      %s153 = sphi 0, %s139
      %s157 = sphi 0, %s157
      %s159 = sphi 0, %s157
      %s160 = sphi 0, %s159
      %s174 = sphi 0, %s160
      %s178 = sphi 0, %s178
      %s180 = sphi 0, %s178
      %s181 = sphi 0, %s180
      %s195 = sphi 0, %s181
      %s201 = sphi 0, %s203
      %s204 = sphi 0, %s201
      %s205 = sphi 0, %s204
      %s221 = sphi 0, %s205
    $region4: #{tpu_custom_call.1} parent=1 // loop_header_branch
      %21 = sbr.rel (%p19) target = $region8
    $region5: #{tpu_custom_call.1} parent=1 // loop_body
      %s23 = ssub.s32 %s18, 1
      %s24 = ssub.s32 %s18, 2
      %s25 = sadd.s32 %s18, 1
      %s26 = ssub.s32 %s18, %s25
      %p27 = scmp.eq.s32.totalorder %s26, 0
      %s29 = sadd.s32 %s28, 1
      %s30 = scalar_select %p27, %s28, %s29
      %p33 = pneg %p27
      %p34 = scmp.eq.s32.totalorder %s18, 1
      %p35 = por %p33, %p34
      %p36 = scmp.ne.s32.totalorder %s28, %s31
      %p37 = scmp.eq.s32.totalorder %s18, 0
      %p38 = por %p36, %p37
      %p39 = scmp.ne.s32.totalorder %s28, %s31
      %p40 = scmp.eq.s32.totalorder %s23, 1
      %p41 = por %p39, %p40
      %p42 = scmp.ne.s32.totalorder %s31, %s32
      %p43 = scmp.eq.s32.totalorder %s23, 0
      %p44 = por %p42, %p43
      %p45 = scmp.ne.s32.totalorder %s31, %s32
      %p46 = scmp.eq.s32.totalorder %s24, 1
      %p47 = por %p45, %p46
      %p49 = scmp.ne.s32.totalorder %s32, %s48
      %p50 = scmp.eq.s32.totalorder %s24, 0
      %p51 = por %p49, %p50
      %s53 = sadd.s32 %s52, 1
      %p56 = scmp.eq.s32.totalorder %s18, 1
      %p57 = scmp.ne.s32.totalorder %s52, %s54
      %p58 = scmp.eq.s32.totalorder %s18, 0
      %p59 = por %p57, %p58
      %p60 = scmp.ne.s32.totalorder %s52, %s54
      %p61 = scmp.eq.s32.totalorder %s23, 1
      %p62 = por %p60, %p61
      %p63 = scmp.ne.s32.totalorder %s54, %s55
      %p64 = scmp.eq.s32.totalorder %s23, 0
      %p65 = por %p63, %p64
      %p66 = scmp.ne.s32.totalorder %s54, %s55
      %p67 = scmp.eq.s32.totalorder %s24, 1
      %p68 = por %p66, %p67
      %p70 = scmp.ne.s32.totalorder %s55, %s69
      %p71 = scmp.eq.s32.totalorder %s24, 0
      %p72 = por %p70, %p71
      %s74 = sadd.s32 %s73, 1
      %p77 = scmp.eq.s32.totalorder %s18, 1
      %p78 = scmp.ne.s32.totalorder %s73, %s75
      %p79 = scmp.eq.s32.totalorder %s18, 0
      %p80 = por %p78, %p79
      %p81 = scmp.ne.s32.totalorder %s73, %s75
      %p82 = scmp.eq.s32.totalorder %s23, 1
      %p83 = por %p81, %p82
      %p84 = scmp.ne.s32.totalorder %s75, %s76
      %p85 = scmp.eq.s32.totalorder %s23, 0
      %p86 = por %p84, %p85
      %p87 = scmp.ne.s32.totalorder %s75, %s76
      %p88 = scmp.eq.s32.totalorder %s24, 1
      %p89 = por %p87, %p88
      %p91 = scmp.ne.s32.totalorder %s76, %s90
      %p92 = scmp.eq.s32.totalorder %s24, 0
      %p93 = por %p91, %p92
      %s95 = sadd.s32 %s94, 1
      %p98 = scmp.eq.s32.totalorder %s18, 1
      %p99 = scmp.ne.s32.totalorder %s94, %s96
      %p100 = scmp.eq.s32.totalorder %s18, 0
      %p101 = por %p99, %p100
      %p102 = scmp.ne.s32.totalorder %s94, %s96
      %p103 = scmp.eq.s32.totalorder %s23, 1
      %p104 = por %p102, %p103
      %p105 = scmp.ne.s32.totalorder %s96, %s97
      %p106 = scmp.eq.s32.totalorder %s23, 0
      %p107 = por %p105, %p106
      %p108 = scmp.ne.s32.totalorder %s96, %s97
      %p109 = scmp.eq.s32.totalorder %s24, 1
      %p110 = por %p108, %p109
      %p112 = scmp.ne.s32.totalorder %s97, %s111
      %p113 = scmp.eq.s32.totalorder %s24, 0
      %p114 = por %p112, %p113
      %s116 = sadd.s32 %s115, 1
      %p119 = scmp.eq.s32.totalorder %s18, 1
      %p120 = scmp.ne.s32.totalorder %s115, %s117
      %p121 = scmp.eq.s32.totalorder %s18, 0
      %p122 = por %p120, %p121
      %p123 = scmp.ne.s32.totalorder %s115, %s117
      %p124 = scmp.eq.s32.totalorder %s23, 1
      %p125 = por %p123, %p124
      %p126 = scmp.ne.s32.totalorder %s117, %s118
      %p127 = scmp.eq.s32.totalorder %s23, 0
      %p128 = por %p126, %p127
      %p129 = scmp.ne.s32.totalorder %s117, %s118
      %p130 = scmp.eq.s32.totalorder %s24, 1
      %p131 = por %p129, %p130
      %p133 = scmp.ne.s32.totalorder %s118, %s132
      %p134 = scmp.eq.s32.totalorder %s24, 0
      %p135 = por %p133, %p134
      %s137 = sadd.s32 %s136, 1
      %p140 = scmp.eq.s32.totalorder %s18, 1
      %p141 = scmp.ne.s32.totalorder %s136, %s138
      %p142 = scmp.eq.s32.totalorder %s18, 0
      %p143 = por %p141, %p142
      %p144 = scmp.ne.s32.totalorder %s136, %s138
      %p145 = scmp.eq.s32.totalorder %s23, 1
      %p146 = por %p144, %p145
      %p147 = scmp.ne.s32.totalorder %s138, %s139
      %p148 = scmp.eq.s32.totalorder %s23, 0
      %p149 = por %p147, %p148
      %p150 = scmp.ne.s32.totalorder %s138, %s139
      %p151 = scmp.eq.s32.totalorder %s24, 1
      %p152 = por %p150, %p151
      %p154 = scmp.ne.s32.totalorder %s139, %s153
      %p155 = scmp.eq.s32.totalorder %s24, 0
      %p156 = por %p154, %p155
      %s158 = sadd.s32 %s157, 1
      %p161 = scmp.eq.s32.totalorder %s18, 1
      %p162 = scmp.ne.s32.totalorder %s157, %s159
      %p163 = scmp.eq.s32.totalorder %s18, 0
      %p164 = por %p162, %p163
      %p165 = scmp.ne.s32.totalorder %s157, %s159
      %p166 = scmp.eq.s32.totalorder %s23, 1
      %p167 = por %p165, %p166
      %p168 = scmp.ne.s32.totalorder %s159, %s160
      %p169 = scmp.eq.s32.totalorder %s23, 0
      %p170 = por %p168, %p169
      %p171 = scmp.ne.s32.totalorder %s159, %s160
      %p172 = scmp.eq.s32.totalorder %s24, 1
      %p173 = por %p171, %p172
      %p175 = scmp.ne.s32.totalorder %s160, %s174
      %p176 = scmp.eq.s32.totalorder %s24, 0
      %p177 = por %p175, %p176
      %s179 = sadd.s32 %s178, 1
      %p182 = scmp.eq.s32.totalorder %s18, 1
      %p183 = scmp.ne.s32.totalorder %s178, %s180
      %p184 = scmp.eq.s32.totalorder %s18, 0
      %p185 = por %p183, %p184
      %p186 = scmp.ne.s32.totalorder %s178, %s180
      %p187 = scmp.eq.s32.totalorder %s23, 1
      %p188 = por %p186, %p187
      %p189 = scmp.ne.s32.totalorder %s180, %s181
      %p190 = scmp.eq.s32.totalorder %s23, 0
      %p191 = por %p189, %p190
      %p192 = scmp.ne.s32.totalorder %s180, %s181
      %p193 = scmp.eq.s32.totalorder %s24, 1
      %p194 = por %p192, %p193
      %p196 = scmp.ne.s32.totalorder %s181, %s195
      %p197 = scmp.eq.s32.totalorder %s24, 0
      %p198 = por %p196, %p197
      %s199 = ssub.s32 %s18, %s25
      %p200 = scmp.eq.s32.totalorder %s199, 0
      %s202 = sadd.s32 %s201, 1
      %s203 = scalar_select %p200, %s201, %s202
      %p206 = pneg %p200
      %p207 = scmp.eq.s32.totalorder %s18, 1
      %p208 = por %p206, %p207
      %p209 = scmp.ne.s32.totalorder %s201, %s204
      %p210 = scmp.eq.s32.totalorder %s18, 0
      %p211 = por %p209, %p210
      %p212 = scmp.ne.s32.totalorder %s201, %s204
      %p213 = scmp.eq.s32.totalorder %s23, 1
      %p214 = por %p212, %p213
      %p215 = scmp.ne.s32.totalorder %s204, %s205
      %p216 = scmp.eq.s32.totalorder %s23, 0
      %p217 = por %p215, %p216
      %p218 = scmp.ne.s32.totalorder %s204, %s205
      %p219 = scmp.eq.s32.totalorder %s24, 1
      %p220 = por %p218, %p219
      %p222 = scmp.ne.s32.totalorder %s205, %s221
      %p223 = scmp.eq.s32.totalorder %s24, 0
      %p224 = por %p222, %p223
      %p225 = scmp.le.s32.totalorder 1, %s18
      %p226 = scmp.lt.s32.totalorder %s18, 3
      %p227 = pnand %p225, %p226
      %p228 = pneg %p227
      // Predicated region
      $region9: #{tpu_custom_call.1} parent=5 // pred_check
        _
      $region10: #{tpu_custom_call.1} parent=5 // pred_check_branch
        %230 = sbr.rel (%p227) target = $region12
      $region11: #{tpu_custom_call.1} parent=5 // pred_region
        %s231 = ssub.s32 %s18, 1
        // Predicated region
        $region13: #{tpu_custom_call.1} parent=11 // pred_check
          %p232 = pneg %p65
        $region14: #{tpu_custom_call.1} parent=11 // pred_check_branch
          %234 = sbr.rel (%p232) target = $region16
        $region15: #{tpu_custom_call.1} parent=11 // pred_region
          _
        $region16: #{tpu_custom_call.1} parent=11 // pred_fallthru
          _
        // Predicated region
        $region17: #{tpu_custom_call.1} parent=11 // pred_check
          %p235 = pneg %p86
        $region18: #{tpu_custom_call.1} parent=11 // pred_check_branch
          %237 = sbr.rel (%p235) target = $region20
        $region19: #{tpu_custom_call.1} parent=11 // pred_region
          _
        $region20: #{tpu_custom_call.1} parent=11 // pred_fallthru
          _
        // Predicated region
        $region21: #{tpu_custom_call.1} parent=11 // pred_check
          %p238 = pneg %p107
        $region22: #{tpu_custom_call.1} parent=11 // pred_check_branch
          %240 = sbr.rel (%p238) target = $region24
        $region23: #{tpu_custom_call.1} parent=11 // pred_region
          _
        $region24: #{tpu_custom_call.1} parent=11 // pred_fallthru
          _
        // Predicated region
        $region25: #{tpu_custom_call.1} parent=11 // pred_check
          %p241 = pneg %p128
        $region26: #{tpu_custom_call.1} parent=11 // pred_check_branch
          %243 = sbr.rel (%p241) target = $region28
        $region27: #{tpu_custom_call.1} parent=11 // pred_region
          _
        $region28: #{tpu_custom_call.1} parent=11 // pred_fallthru
          _
        // Predicated region
        $region29: #{tpu_custom_call.1} parent=11 // pred_check
          %p244 = pneg %p149
        $region30: #{tpu_custom_call.1} parent=11 // pred_check_branch
          %246 = sbr.rel (%p244) target = $region32
        $region31: #{tpu_custom_call.1} parent=11 // pred_region
          _
        $region32: #{tpu_custom_call.1} parent=11 // pred_fallthru
          _
        // Predicated region
        $region33: #{tpu_custom_call.1} parent=11 // pred_check
          %p247 = pneg %p170
        $region34: #{tpu_custom_call.1} parent=11 // pred_check_branch
          %249 = sbr.rel (%p247) target = $region36
        $region35: #{tpu_custom_call.1} parent=11 // pred_region
          _
        $region36: #{tpu_custom_call.1} parent=11 // pred_fallthru
          _
        // Predicated region
        $region37: #{tpu_custom_call.1} parent=11 // pred_check
          %p250 = pneg %p191
        $region38: #{tpu_custom_call.1} parent=11 // pred_check_branch
          %252 = sbr.rel (%p250) target = $region40
        $region39: #{tpu_custom_call.1} parent=11 // pred_region
          _
        $region40: #{tpu_custom_call.1} parent=11 // pred_fallthru
          _
      $region12: #{tpu_custom_call.1} parent=5 // pred_fallthru
        _
      %p253 = scmp.lt.s32.totalorder %s18, 2
      // Predicated region
      $region41: #{tpu_custom_call.1} parent=5 // pred_check
        %p254 = pneg %p253
      $region42: #{tpu_custom_call.1} parent=5 // pred_check_branch
        %256 = sbr.rel (%p254) target = $region44
      $region43: #{tpu_custom_call.1} parent=5 // pred_region
        // Predicated region
        $region45: #{tpu_custom_call.1} parent=43 // pred_check
          %p257 = pneg %p38
        $region46: #{tpu_custom_call.1} parent=43 // pred_check_branch
          %259 = sbr.rel (%p257) target = $region48
        $region47: #{tpu_custom_call.1} parent=43 // pred_region
          %s260 = smul.u32 8, %s18
          %p261 = scmp.lt.s32.totalorder %s260, 15
          %s262 = scalar_select %p261, %s260, 15
          %s263 = smul.addr %s262, 4
          %s264 = scalar_lea.vmem %s0, %s263
          %s265 = smul.u32 8, %s18
        $region48: #{tpu_custom_call.1} parent=43 // pred_fallthru
          _
      $region44: #{tpu_custom_call.1} parent=5 // pred_fallthru
        _
      %p266 = scmp.le.s32.totalorder 1, %s18
      %p267 = scmp.lt.s32.totalorder %s18, 3
      %p268 = pnand %p266, %p267
      %p269 = pneg %p268
      // Predicated region
      $region49: #{tpu_custom_call.1} parent=5 // pred_check
        _
      $region50: #{tpu_custom_call.1} parent=5 // pred_check_branch
        %271 = sbr.rel (%p268) target = $region52
      $region51: #{tpu_custom_call.1} parent=5 // pred_region
        %s272 = ssub.s32 %s18, 1
        %s273 = smul.u32 8, %s23
        %p274 = scmp.lt.s32.totalorder %s273, 15
        %s275 = scalar_select %p274, %s273, 15
        %s276 = smul.addr %s275, 4
        %s277 = scalar_lea.vmem %s0, %s276
        %p278 = pneg %p44
        %p279 = pneg %p41
        %p280 = pneg %p65
        %p281 = pneg %p62
        %p282 = pneg %p86
        %p283 = pneg %p83
        %p284 = pneg %p107
        %p285 = pneg %p104
        %p286 = pneg %p128
        %p287 = pneg %p125
        %p288 = pneg %p149
        %p289 = pneg %p146
        %p290 = pneg %p170
        %p291 = pneg %p167
        %p292 = pneg %p191
        %p293 = pneg %p188
        %p294 = pneg %p217
        %p295 = pneg %p214
        %s296 = sand.u32 %s204, 1
        %s297 = scalar_lea.sflag [#allocation4], %s296
        %s298 = sand.u32 %s204, 1
        %s299 = smul.addr %s298, 8
        %s300 = scalar_lea.vmem [#allocation3], %s299
        %s301 = smul.u32 8, %s23
        %p302 = scmp.lt.s32.totalorder %s301, 15
        %s303 = scalar_select %p302, %s301, 15
        %s304 = smul.addr %s303, 4
        %s305 = scalar_lea.vmem %s0, %s304
        %s306 = smul.u32 8, %s23
        %v308 = vld [vmem:[%s305] sm:$0xf]
        %v309 = vld [vmem:[%s305 + $0x4] sm:$0xf]
        %v310 = vld [vmem:[%s305 + $0x8] sm:$0xf]
        %v311 = vld [vmem:[%s305 + $0xc] sm:$0xf]
        %v312 = vld [vmem:[%s305 + $0x10] sm:$0xf]
        %v313 = vld [vmem:[%s305 + $0x14] sm:$0xf]
        %v314 = vld [vmem:[%s305 + $0x18] sm:$0xf]
        %v315 = vld [vmem:[%s305 + $0x1c] sm:$0xf]
        %v316 = vld [vmem:[%s1] sm:$0xf]
        %v317 = vld [vmem:[%s1 + $0x4] sm:$0xf]
        %v318 = vld [vmem:[%s3] sm:$0x1]
        %v320 = vlaneseq
        %v321 = vshrl.u32 %v320, 7
        %v322 = vsub.s32 0, %v321
        %v323 = vrot.slane %v318, %v322
        %v333 = vunpack.c.l.b16 %v308
        %v334 = vunpack.c.l.b16 %v309
        %v335 = vunpack.c.l.b16 %v310
        %v336 = vunpack.c.l.b16 %v311
        %v337 = vunpack.c.l.b16 %v312
        %v338 = vunpack.c.l.b16 %v313
        %v339 = vunpack.c.l.b16 %v314
        %v340 = vunpack.c.l.b16 %v315
        %v341 = vpack.c.b16 %v334, %v333
        %v342 = vpack.c.b16 %v336, %v335
        %v343 = vpack.c.b16 %v338, %v337
        %v344 = vpack.c.b16 %v340, %v339
        %v347 = vunpack.c.l.b16 %v316
        %v348 = vunpack.c.l.b16 %v317
        %v349 = vpack.c.b16 %v348, %v347
        %vm351 = vcmask 130048
        %v353 = vsel %vm351, %v341, 0
        %v356 = vsel %vm351, %v342, 0
        %v359 = vsel %vm351, %v343, 0
        %v362 = vsel %vm351, %v344, 0
        %364 = vmatprep.subr.bf16.mxu0 0
        %365 = vmatpush1.bf16.msra.mxu0 %v349
        %366 = vmatprep.subr.bf16.mxu0 0
        %367 = vmatpush1.bf16.msra.mxu0 0
        %368 = vmatprep.subr.bf16.mxu0 0
        %369 = vmatpush1.bf16.msra.mxu0 0
        %370 = vmatprep.subr.bf16.mxu0 0
        %371 = vmatpush1.bf16.msra.mxu0 0
        %372 = vmatprep.subr.bf16.mxu0 0
        %373 = vmatpush1.bf16.msra.mxu0 0
        %374 = vmatprep.subr.bf16.mxu0 0
        %375 = vmatpush1.bf16.msra.mxu0 0
        %376 = vmatprep.subr.bf16.mxu0 0
        %377 = vmatpush1.bf16.msra.mxu0 0
        %378 = vmatprep.subr.bf16.mxu0 0
        %379 = vmatpush1.bf16.msra.mxu0 0
        %380 = vmatprep.subr.bf16.mxu0 0
        %381 = vmatpush1.bf16.msra.mxu0 0
        %382 = vmatprep.subr.bf16.mxu0 0
        %383 = vmatpush1.bf16.msra.mxu0 0
        %384 = vmatprep.subr.bf16.mxu0 0
        %385 = vmatpush1.bf16.msra.mxu0 0
        %386 = vmatprep.subr.bf16.mxu0 0
        %387 = vmatpush1.bf16.msra.mxu0 0
        %388 = vmatprep.subr.bf16.mxu0 0
        %389 = vmatpush1.bf16.msra.mxu0 0
        %390 = vmatprep.subr.bf16.mxu0 0
        %391 = vmatpush1.bf16.msra.mxu0 0
        %392 = vmatprep.subr.bf16.mxu0 0
        %393 = vmatpush1.bf16.msra.mxu0 0
        %394 = vmatprep.subr.bf16.mxu0 0
        %395 = vmatpush1.bf16.msra.mxu0 0
        %396 = vmatprep.mubr.bf16.mxu0 0
        %397 = vmatmul.mubr.bf16.gmra.mrb[0].mxu0 %v353
        %v398 = vpop.f32.mrb[0].mxu0
        %v399 = vadd.f32 %v323, %v398
        %v400 = vpop.f32.mrb[0].mxu0
        %v401 = vpop.f32.mrb[0].mxu0
        %v402 = vadd.f32 %v323, %v401
        %v403 = vpop.f32.mrb[0].mxu0
        %404 = vmatprep.mubr.bf16.mxu0 0
        %405 = vmatmul.mubr.bf16.gmra.mrb[0].mxu0 %v356
        %v406 = vpop.f32.mrb[0].mxu0
        %v407 = vadd.f32 %v323, %v406
        %v408 = vpop.f32.mrb[0].mxu0
        %v409 = vpop.f32.mrb[0].mxu0
        %v410 = vadd.f32 %v323, %v409
        %v411 = vpop.f32.mrb[0].mxu0
        %412 = vmatprep.mubr.bf16.mxu0 0
        %413 = vmatmul.mubr.bf16.gmra.mrb[0].mxu0 %v359
        %v414 = vpop.f32.mrb[0].mxu0
        %v415 = vadd.f32 %v323, %v414
        %v416 = vpop.f32.mrb[0].mxu0
        %v417 = vpop.f32.mrb[0].mxu0
        %v418 = vadd.f32 %v323, %v417
        %v419 = vpop.f32.mrb[0].mxu0
        %420 = vmatprep.mubr.bf16.mxu0 0
        %421 = vmatmul.mubr.bf16.gmra.mrb[0].mxu0 %v362
        %v422 = vpop.f32.mrb[0].mxu0
        %v423 = vadd.f32 %v323, %v422
        %v424 = vpop.f32.mrb[0].mxu0
        %v425 = vpop.f32.mrb[0].mxu0
        %v426 = vadd.f32 %v323, %v425
        %v427 = vpop.f32.mrb[0].mxu0
        %428 = vdwg.mxu0
        %v429 = vld [vmem:[%s2] sm:$0xf]
        %v430 = vld [vmem:[%s2 + $0x4] sm:$0xf]
        %v431 = vld [vmem:[%s2 + $0x8] sm:$0xf]
        %v432 = vld [vmem:[%s2 + $0xc] sm:$0xf]
        %v433 = vxor.u32 %v399, 2147483648
        %v434 = vmul.f32 %v433, 1.442695
        %v435 = vpow.pop %v434
        %v436 = vadd.f32 %v435, 1.0
        %v437 = vrcp.pop %v436
        %v438 = vmul.f32 1.0, %v437
        %v439 = vtanh.pop %v399
        %441 = vrot.lane.b32.xlu0 %v439, 64
        %v442 = vpop.permute.xlu0 %441
        %v444 = vmul.f32 %v438, %v442
        %v445 = vtanh.pop %v444
        %447 = vrot.lane.b32.xlu0 %v445, 96
        %v448 = vpop.permute.xlu0 %447
        %v450 = vmul.f32 %v438, %v448
        %v451 = vpack.c.bf16 %v450, %v450
        %453 = vrot.lane.b32.xlu0 %v451, 32
        %v454 = vpop.permute.xlu0 %453
        %v459 = vunpack.c.l.b16 %v429
        %v460 = vunpack.c.l.b16 %v430
        %v461 = vunpack.c.l.b16 %v431
        %v462 = vunpack.c.l.b16 %v432
        %v463 = vpack.c.b16 %v460, %v459
        %v464 = vpack.c.b16 %v462, %v461
        %vm467 = vcmask 261120
        %v469 = vsel %vm467, %v454, 0
        %471 = vmatprep.subr.bf16.mxu0 0
        %472 = vmatpush1.bf16.msra.mxu0 %v463
        %473 = vmatprep.subr.bf16.mxu0 0
        %474 = vmatpush1.bf16.msra.mxu0 %v464
        %475 = vmatprep.subr.bf16.mxu0 0
        %476 = vmatpush1.bf16.msra.mxu0 0
        %477 = vmatprep.subr.bf16.mxu0 0
        %478 = vmatpush1.bf16.msra.mxu0 0
        %479 = vmatprep.subr.bf16.mxu0 0
        %480 = vmatpush1.bf16.msra.mxu0 0
        %481 = vmatprep.subr.bf16.mxu0 0
        %482 = vmatpush1.bf16.msra.mxu0 0
        %483 = vmatprep.subr.bf16.mxu0 0
        %484 = vmatpush1.bf16.msra.mxu0 0
        %485 = vmatprep.subr.bf16.mxu0 0
        %486 = vmatpush1.bf16.msra.mxu0 0
        %487 = vmatprep.subr.bf16.mxu0 0
        %488 = vmatpush1.bf16.msra.mxu0 0
        %489 = vmatprep.subr.bf16.mxu0 0
        %490 = vmatpush1.bf16.msra.mxu0 0
        %491 = vmatprep.subr.bf16.mxu0 0
        %492 = vmatpush1.bf16.msra.mxu0 0
        %493 = vmatprep.subr.bf16.mxu0 0
        %494 = vmatpush1.bf16.msra.mxu0 0
        %495 = vmatprep.subr.bf16.mxu0 0
        %496 = vmatpush1.bf16.msra.mxu0 0
        %497 = vmatprep.subr.bf16.mxu0 0
        %498 = vmatpush1.bf16.msra.mxu0 0
        %499 = vmatprep.subr.bf16.mxu0 0
        %500 = vmatpush1.bf16.msra.mxu0 0
        %501 = vmatprep.subr.bf16.mxu0 0
        %502 = vmatpush1.bf16.msra.mxu0 0
        %503 = vmatprep.mubr.bf16.mxu0 0
        %504 = vmatmul.mubr.bf16.gmra.mrb[0].mxu0 %v469
        %v505 = vpop.f32.mrb[0].mxu0
        %v506 = vadd.f32 0.0, %v505
        %v507 = vpop.f32.mrb[0].mxu0
        %v508 = vpop.f32.mrb[0].mxu0
        %v509 = vpop.f32.mrb[0].mxu0
        %510 = vdwg.mxu0
        %v511 = vadd.f32 %v402, %v506
        %v512 = vxor.u32 %v511, 2147483648
        %v513 = vmul.f32 %v512, 1.442695
        %v514 = vpow.pop %v513
        %v515 = vadd.f32 %v514, 1.0
        %v516 = vrcp.pop %v515
        %v517 = vmul.f32 1.0, %v516
        %v518 = vtanh.pop %v511
        %520 = vrot.lane.b32.xlu0 %v444, 32
        %v521 = vpop.permute.xlu0 %520
        %v523 = vmul.f32 %v517, %v521
        %525 = vrot.lane.b32.xlu0 %v518, 64
        %v526 = vpop.permute.xlu0 %525
        %v528 = vmul.f32 %v517, %v526
        %530 = vrot.lane.b32.xlu0 %v528, 32
        %v531 = vpop.permute.xlu0 %530
        %v533 = vadd.f32 %v523, %v531
        %v534 = vtanh.pop %v533
        %536 = vrot.lane.b32.xlu0 %v534, 64
        %v537 = vpop.permute.xlu0 %536
        %v539 = vmul.f32 %v517, %v537
        %v540 = vpack.c.bf16 %v539, %v539
        %542 = vrot.lane.b32.xlu0 %v540, 32
        %v543 = vpop.permute.xlu0 %542
        %v545 = vsel %vm467, %v543, 0
        %547 = vmatprep.subr.bf16.mxu0 0
        %548 = vmatpush1.bf16.msra.mxu0 %v463
        %549 = vmatprep.subr.bf16.mxu0 0
        %550 = vmatpush1.bf16.msra.mxu0 %v464
        %551 = vmatprep.subr.bf16.mxu0 0
        %552 = vmatpush1.bf16.msra.mxu0 0
        %553 = vmatprep.subr.bf16.mxu0 0
        %554 = vmatpush1.bf16.msra.mxu0 0
        %555 = vmatprep.subr.bf16.mxu0 0
        %556 = vmatpush1.bf16.msra.mxu0 0
        %557 = vmatprep.subr.bf16.mxu0 0
        %558 = vmatpush1.bf16.msra.mxu0 0
        %559 = vmatprep.subr.bf16.mxu0 0
        %560 = vmatpush1.bf16.msra.mxu0 0
        %561 = vmatprep.subr.bf16.mxu0 0
        %562 = vmatpush1.bf16.msra.mxu0 0
        %563 = vmatprep.subr.bf16.mxu0 0
        %564 = vmatpush1.bf16.msra.mxu0 0
        %565 = vmatprep.subr.bf16.mxu0 0
        %566 = vmatpush1.bf16.msra.mxu0 0
        %567 = vmatprep.subr.bf16.mxu0 0
        %568 = vmatpush1.bf16.msra.mxu0 0
        %569 = vmatprep.subr.bf16.mxu0 0
        %570 = vmatpush1.bf16.msra.mxu0 0
        %571 = vmatprep.subr.bf16.mxu0 0
        %572 = vmatpush1.bf16.msra.mxu0 0
        %573 = vmatprep.subr.bf16.mxu0 0
        %574 = vmatpush1.bf16.msra.mxu0 0
        %575 = vmatprep.subr.bf16.mxu0 0
        %576 = vmatpush1.bf16.msra.mxu0 0
        %577 = vmatprep.subr.bf16.mxu0 0
        %578 = vmatpush1.bf16.msra.mxu0 0
        %579 = vmatprep.mubr.bf16.mxu0 0
        %580 = vmatmul.mubr.bf16.gmra.mrb[0].mxu0 %v545
        %v581 = vpop.f32.mrb[0].mxu0
        %v582 = vadd.f32 0.0, %v581
        %v583 = vpop.f32.mrb[0].mxu0
        %v584 = vpop.f32.mrb[0].mxu0
        %v585 = vpop.f32.mrb[0].mxu0
        %586 = vdwg.mxu0
        %v587 = vadd.f32 %v407, %v582
        %v588 = vxor.u32 %v587, 2147483648
        %v589 = vmul.f32 %v588, 1.442695
        %v590 = vpow.pop %v589
        %v591 = vadd.f32 %v590, 1.0
        %v592 = vrcp.pop %v591
        %v593 = vmul.f32 1.0, %v592
        %v594 = vtanh.pop %v587
        %v595 = vmul.f32 %v593, %v533
        %597 = vrot.lane.b32.xlu0 %v594, 64
        %v598 = vpop.permute.xlu0 %597
        %v600 = vmul.f32 %v593, %v598
        %602 = vrot.lane.b32.xlu0 %v600, 32
        %v603 = vpop.permute.xlu0 %602
        %v605 = vadd.f32 %v595, %v603
        %v606 = vtanh.pop %v605
        %608 = vrot.lane.b32.xlu0 %v606, 64
        %v609 = vpop.permute.xlu0 %608
        %v611 = vmul.f32 %v593, %v609
        %v612 = vpack.c.bf16 %v611, %v611
        %614 = vrot.lane.b32.xlu0 %v612, 32
        %v615 = vpop.permute.xlu0 %614
        %v617 = vsel %vm467, %v615, 0
        %619 = vmatprep.subr.bf16.mxu0 0
        %620 = vmatpush1.bf16.msra.mxu0 %v463
        %621 = vmatprep.subr.bf16.mxu0 0
        %622 = vmatpush1.bf16.msra.mxu0 %v464
        %623 = vmatprep.subr.bf16.mxu0 0
        %624 = vmatpush1.bf16.msra.mxu0 0
        %625 = vmatprep.subr.bf16.mxu0 0
        %626 = vmatpush1.bf16.msra.mxu0 0
        %627 = vmatprep.subr.bf16.mxu0 0
        %628 = vmatpush1.bf16.msra.mxu0 0
        %629 = vmatprep.subr.bf16.mxu0 0
        %630 = vmatpush1.bf16.msra.mxu0 0
        %631 = vmatprep.subr.bf16.mxu0 0
        %632 = vmatpush1.bf16.msra.mxu0 0
        %633 = vmatprep.subr.bf16.mxu0 0
        %634 = vmatpush1.bf16.msra.mxu0 0
        %635 = vmatprep.subr.bf16.mxu0 0
        %636 = vmatpush1.bf16.msra.mxu0 0
        %637 = vmatprep.subr.bf16.mxu0 0
        %638 = vmatpush1.bf16.msra.mxu0 0
        %639 = vmatprep.subr.bf16.mxu0 0
        %640 = vmatpush1.bf16.msra.mxu0 0
        %641 = vmatprep.subr.bf16.mxu0 0
        %642 = vmatpush1.bf16.msra.mxu0 0
        %643 = vmatprep.subr.bf16.mxu0 0
        %644 = vmatpush1.bf16.msra.mxu0 0
        %645 = vmatprep.subr.bf16.mxu0 0
        %646 = vmatpush1.bf16.msra.mxu0 0
        %647 = vmatprep.subr.bf16.mxu0 0
        %648 = vmatpush1.bf16.msra.mxu0 0
        %649 = vmatprep.subr.bf16.mxu0 0
        %650 = vmatpush1.bf16.msra.mxu0 0
        %651 = vmatprep.mubr.bf16.mxu0 0
        %652 = vmatmul.mubr.bf16.gmra.mrb[0].mxu0 %v617
        %v653 = vpop.f32.mrb[0].mxu0
        %v654 = vadd.f32 0.0, %v653
        %v655 = vpop.f32.mrb[0].mxu0
        %v656 = vpop.f32.mrb[0].mxu0
        %v657 = vpop.f32.mrb[0].mxu0
        %658 = vdwg.mxu0
        %v659 = vadd.f32 %v410, %v654
        %v660 = vxor.u32 %v659, 2147483648
        %v661 = vmul.f32 %v660, 1.442695
        %v662 = vpow.pop %v661
        %v663 = vadd.f32 %v662, 1.0
        %v664 = vrcp.pop %v663
        %v665 = vmul.f32 1.0, %v664
        %v666 = vtanh.pop %v659
        %v667 = vmul.f32 %v665, %v605
        %669 = vrot.lane.b32.xlu0 %v666, 64
        %v670 = vpop.permute.xlu0 %669
        %v672 = vmul.f32 %v665, %v670
        %674 = vrot.lane.b32.xlu0 %v672, 32
        %v675 = vpop.permute.xlu0 %674
        %v677 = vadd.f32 %v667, %v675
        %v678 = vtanh.pop %v677
        %680 = vrot.lane.b32.xlu0 %v678, 64
        %v681 = vpop.permute.xlu0 %680
        %v683 = vmul.f32 %v665, %v681
        %v684 = vpack.c.bf16 %v683, %v683
        %686 = vrot.lane.b32.xlu0 %v684, 32
        %v687 = vpop.permute.xlu0 %686
        %v689 = vsel %vm467, %v687, 0
        %691 = vmatprep.subr.bf16.mxu0 0
        %692 = vmatpush1.bf16.msra.mxu0 %v463
        %693 = vmatprep.subr.bf16.mxu0 0
        %694 = vmatpush1.bf16.msra.mxu0 %v464
        %695 = vmatprep.subr.bf16.mxu0 0
        %696 = vmatpush1.bf16.msra.mxu0 0
        %697 = vmatprep.subr.bf16.mxu0 0
        %698 = vmatpush1.bf16.msra.mxu0 0
        %699 = vmatprep.subr.bf16.mxu0 0
        %700 = vmatpush1.bf16.msra.mxu0 0
        %701 = vmatprep.subr.bf16.mxu0 0
        %702 = vmatpush1.bf16.msra.mxu0 0
        %703 = vmatprep.subr.bf16.mxu0 0
        %704 = vmatpush1.bf16.msra.mxu0 0
        %705 = vmatprep.subr.bf16.mxu0 0
        %706 = vmatpush1.bf16.msra.mxu0 0
        %707 = vmatprep.subr.bf16.mxu0 0
        %708 = vmatpush1.bf16.msra.mxu0 0
        %709 = vmatprep.subr.bf16.mxu0 0
        %710 = vmatpush1.bf16.msra.mxu0 0
        %711 = vmatprep.subr.bf16.mxu0 0
        %712 = vmatpush1.bf16.msra.mxu0 0
        %713 = vmatprep.subr.bf16.mxu0 0
        %714 = vmatpush1.bf16.msra.mxu0 0
        %715 = vmatprep.subr.bf16.mxu0 0
        %716 = vmatpush1.bf16.msra.mxu0 0
        %717 = vmatprep.subr.bf16.mxu0 0
        %718 = vmatpush1.bf16.msra.mxu0 0
        %719 = vmatprep.subr.bf16.mxu0 0
        %720 = vmatpush1.bf16.msra.mxu0 0
        %721 = vmatprep.subr.bf16.mxu0 0
        %722 = vmatpush1.bf16.msra.mxu0 0
        %723 = vmatprep.mubr.bf16.mxu0 0
        %724 = vmatmul.mubr.bf16.gmra.mrb[0].mxu0 %v689
        %v725 = vpop.f32.mrb[0].mxu0
        %v726 = vadd.f32 0.0, %v725
        %v727 = vpop.f32.mrb[0].mxu0
        %v728 = vpop.f32.mrb[0].mxu0
        %v729 = vpop.f32.mrb[0].mxu0
        %730 = vdwg.mxu0
        %v731 = vadd.f32 %v415, %v726
        %v732 = vxor.u32 %v731, 2147483648
        %v733 = vmul.f32 %v732, 1.442695
        %v734 = vpow.pop %v733
        %v735 = vadd.f32 %v734, 1.0
        %v736 = vrcp.pop %v735
        %v737 = vmul.f32 1.0, %v736
        %v738 = vtanh.pop %v731
        %v739 = vmul.f32 %v737, %v677
        %741 = vrot.lane.b32.xlu0 %v738, 64
        %v742 = vpop.permute.xlu0 %741
        %v744 = vmul.f32 %v737, %v742
        %746 = vrot.lane.b32.xlu0 %v744, 32
        %v747 = vpop.permute.xlu0 %746
        %v749 = vadd.f32 %v739, %v747
        %v750 = vtanh.pop %v749
        %752 = vrot.lane.b32.xlu0 %v750, 64
        %v753 = vpop.permute.xlu0 %752
        %v755 = vmul.f32 %v737, %v753
        %v756 = vpack.c.bf16 %v755, %v755
        %758 = vrot.lane.b32.xlu0 %v756, 32
        %v759 = vpop.permute.xlu0 %758
        %v761 = vsel %vm467, %v759, 0
        %763 = vmatprep.subr.bf16.mxu0 0
        %764 = vmatpush1.bf16.msra.mxu0 %v463
        %765 = vmatprep.subr.bf16.mxu0 0
        %766 = vmatpush1.bf16.msra.mxu0 %v464
        %767 = vmatprep.subr.bf16.mxu0 0
        %768 = vmatpush1.bf16.msra.mxu0 0
        %769 = vmatprep.subr.bf16.mxu0 0
        %770 = vmatpush1.bf16.msra.mxu0 0
        %771 = vmatprep.subr.bf16.mxu0 0
        %772 = vmatpush1.bf16.msra.mxu0 0
        %773 = vmatprep.subr.bf16.mxu0 0
        %774 = vmatpush1.bf16.msra.mxu0 0
        %775 = vmatprep.subr.bf16.mxu0 0
        %776 = vmatpush1.bf16.msra.mxu0 0
        %777 = vmatprep.subr.bf16.mxu0 0
        %778 = vmatpush1.bf16.msra.mxu0 0
        %779 = vmatprep.subr.bf16.mxu0 0
        %780 = vmatpush1.bf16.msra.mxu0 0
        %781 = vmatprep.subr.bf16.mxu0 0
        %782 = vmatpush1.bf16.msra.mxu0 0
        %783 = vmatprep.subr.bf16.mxu0 0
        %784 = vmatpush1.bf16.msra.mxu0 0
        %785 = vmatprep.subr.bf16.mxu0 0
        %786 = vmatpush1.bf16.msra.mxu0 0
        %787 = vmatprep.subr.bf16.mxu0 0
        %788 = vmatpush1.bf16.msra.mxu0 0
        %789 = vmatprep.subr.bf16.mxu0 0
        %790 = vmatpush1.bf16.msra.mxu0 0
        %791 = vmatprep.subr.bf16.mxu0 0
        %792 = vmatpush1.bf16.msra.mxu0 0
        %793 = vmatprep.subr.bf16.mxu0 0
        %794 = vmatpush1.bf16.msra.mxu0 0
        %795 = vmatprep.mubr.bf16.mxu0 0
        %796 = vmatmul.mubr.bf16.gmra.mrb[0].mxu0 %v761
        %v797 = vpop.f32.mrb[0].mxu0
        %v798 = vadd.f32 0.0, %v797
        %v799 = vpop.f32.mrb[0].mxu0
        %v800 = vpop.f32.mrb[0].mxu0
        %v801 = vpop.f32.mrb[0].mxu0
        %802 = vdwg.mxu0
        %v803 = vadd.f32 %v418, %v798
        %v804 = vxor.u32 %v803, 2147483648
        %v805 = vmul.f32 %v804, 1.442695
        %v806 = vpow.pop %v805
        %v807 = vadd.f32 %v806, 1.0
        %v808 = vrcp.pop %v807
        %v809 = vmul.f32 1.0, %v808
        %v810 = vtanh.pop %v803
        %v811 = vmul.f32 %v809, %v749
        %813 = vrot.lane.b32.xlu0 %v810, 64
        %v814 = vpop.permute.xlu0 %813
        %v816 = vmul.f32 %v809, %v814
        %818 = vrot.lane.b32.xlu0 %v816, 32
        %v819 = vpop.permute.xlu0 %818
        %v821 = vadd.f32 %v811, %v819
        %v822 = vtanh.pop %v821
        %824 = vrot.lane.b32.xlu0 %v822, 64
        %v825 = vpop.permute.xlu0 %824
        %v827 = vmul.f32 %v809, %v825
        %v828 = vpack.c.bf16 %v827, %v827
        %830 = vrot.lane.b32.xlu0 %v828, 32
        %v831 = vpop.permute.xlu0 %830
        %v833 = vsel %vm467, %v831, 0
        %835 = vmatprep.subr.bf16.mxu0 0
        %836 = vmatpush1.bf16.msra.mxu0 %v463
        %837 = vmatprep.subr.bf16.mxu0 0
        %838 = vmatpush1.bf16.msra.mxu0 %v464
        %839 = vmatprep.subr.bf16.mxu0 0
        %840 = vmatpush1.bf16.msra.mxu0 0
        %841 = vmatprep.subr.bf16.mxu0 0
        %842 = vmatpush1.bf16.msra.mxu0 0
        %843 = vmatprep.subr.bf16.mxu0 0
        %844 = vmatpush1.bf16.msra.mxu0 0
        %845 = vmatprep.subr.bf16.mxu0 0
        %846 = vmatpush1.bf16.msra.mxu0 0
        %847 = vmatprep.subr.bf16.mxu0 0
        %848 = vmatpush1.bf16.msra.mxu0 0
        %849 = vmatprep.subr.bf16.mxu0 0
        %850 = vmatpush1.bf16.msra.mxu0 0
        %851 = vmatprep.subr.bf16.mxu0 0
        %852 = vmatpush1.bf16.msra.mxu0 0
        %853 = vmatprep.subr.bf16.mxu0 0
        %854 = vmatpush1.bf16.msra.mxu0 0
        %855 = vmatprep.subr.bf16.mxu0 0
        %856 = vmatpush1.bf16.msra.mxu0 0
        %857 = vmatprep.subr.bf16.mxu0 0
        %858 = vmatpush1.bf16.msra.mxu0 0
        %859 = vmatprep.subr.bf16.mxu0 0
        %860 = vmatpush1.bf16.msra.mxu0 0
        %861 = vmatprep.subr.bf16.mxu0 0
        %862 = vmatpush1.bf16.msra.mxu0 0
        %863 = vmatprep.subr.bf16.mxu0 0
        %864 = vmatpush1.bf16.msra.mxu0 0
        %865 = vmatprep.subr.bf16.mxu0 0
        %866 = vmatpush1.bf16.msra.mxu0 0
        %867 = vmatprep.mubr.bf16.mxu0 0
        %868 = vmatmul.mubr.bf16.gmra.mrb[0].mxu0 %v833
        %v869 = vpop.f32.mrb[0].mxu0
        %v870 = vadd.f32 0.0, %v869
        %v871 = vpop.f32.mrb[0].mxu0
        %v872 = vpop.f32.mrb[0].mxu0
        %v873 = vpop.f32.mrb[0].mxu0
        %874 = vdwg.mxu0
        %v875 = vadd.f32 %v423, %v870
        %v876 = vxor.u32 %v875, 2147483648
        %v877 = vmul.f32 %v876, 1.442695
        %v878 = vpow.pop %v877
        %v879 = vadd.f32 %v878, 1.0
        %v880 = vrcp.pop %v879
        %v881 = vmul.f32 1.0, %v880
        %v882 = vtanh.pop %v875
        %v883 = vmul.f32 %v881, %v821
        %885 = vrot.lane.b32.xlu0 %v882, 64
        %v886 = vpop.permute.xlu0 %885
        %v888 = vmul.f32 %v881, %v886
        %890 = vrot.lane.b32.xlu0 %v888, 32
        %v891 = vpop.permute.xlu0 %890
        %v893 = vadd.f32 %v883, %v891
        %v894 = vtanh.pop %v893
        %896 = vrot.lane.b32.xlu0 %v894, 64
        %v897 = vpop.permute.xlu0 %896
        %v899 = vmul.f32 %v881, %v897
        %v900 = vpack.c.bf16 %v899, %v899
        %902 = vrot.lane.b32.xlu0 %v900, 32
        %v903 = vpop.permute.xlu0 %902
        %v905 = vsel %vm467, %v903, 0
        %907 = vmatprep.subr.bf16.mxu0 0
        %908 = vmatpush1.bf16.msra.mxu0 %v463
        %909 = vmatprep.subr.bf16.mxu0 0
        %910 = vmatpush1.bf16.msra.mxu0 %v464
        %911 = vmatprep.subr.bf16.mxu0 0
        %912 = vmatpush1.bf16.msra.mxu0 0
        %913 = vmatprep.subr.bf16.mxu0 0
        %914 = vmatpush1.bf16.msra.mxu0 0
        %915 = vmatprep.subr.bf16.mxu0 0
        %916 = vmatpush1.bf16.msra.mxu0 0
        %917 = vmatprep.subr.bf16.mxu0 0
        %918 = vmatpush1.bf16.msra.mxu0 0
        %919 = vmatprep.subr.bf16.mxu0 0
        %920 = vmatpush1.bf16.msra.mxu0 0
        %921 = vmatprep.subr.bf16.mxu0 0
        %922 = vmatpush1.bf16.msra.mxu0 0
        %923 = vmatprep.subr.bf16.mxu0 0
        %924 = vmatpush1.bf16.msra.mxu0 0
        %925 = vmatprep.subr.bf16.mxu0 0
        %926 = vmatpush1.bf16.msra.mxu0 0
        %927 = vmatprep.subr.bf16.mxu0 0
        %928 = vmatpush1.bf16.msra.mxu0 0
        %929 = vmatprep.subr.bf16.mxu0 0
        %930 = vmatpush1.bf16.msra.mxu0 0
        %931 = vmatprep.subr.bf16.mxu0 0
        %932 = vmatpush1.bf16.msra.mxu0 0
        %933 = vmatprep.subr.bf16.mxu0 0
        %934 = vmatpush1.bf16.msra.mxu0 0
        %935 = vmatprep.subr.bf16.mxu0 0
        %936 = vmatpush1.bf16.msra.mxu0 0
        %937 = vmatprep.subr.bf16.mxu0 0
        %938 = vmatpush1.bf16.msra.mxu0 0
        %939 = vmatprep.mubr.bf16.mxu0 0
        %940 = vmatmul.mubr.bf16.gmra.mrb[0].mxu0 %v905
        %v941 = vpop.f32.mrb[0].mxu0
        %v942 = vadd.f32 0.0, %v941
        %v943 = vpop.f32.mrb[0].mxu0
        %v944 = vpop.f32.mrb[0].mxu0
        %v945 = vpop.f32.mrb[0].mxu0
        %946 = vdwg.mxu0
        %v947 = vadd.f32 %v426, %v942
        %v948 = vxor.u32 %v947, 2147483648
        %v949 = vmul.f32 %v948, 1.442695
        %v950 = vpow.pop %v949
        %v951 = vadd.f32 %v950, 1.0
        %v952 = vrcp.pop %v951
        %v953 = vmul.f32 1.0, %v952
        %v954 = vtanh.pop %v947
        %v955 = vmul.f32 %v953, %v893
        %957 = vrot.lane.b32.xlu0 %v954, 64
        %v958 = vpop.permute.xlu0 %957
        %v960 = vmul.f32 %v953, %v958
        %962 = vrot.lane.b32.xlu0 %v960, 32
        %v963 = vpop.permute.xlu0 %962
        %v965 = vadd.f32 %v955, %v963
        %v966 = vtanh.pop %v965
        %968 = vrot.lane.b32.xlu0 %v966, 64
        %v969 = vpop.permute.xlu0 %968
        %v971 = vmul.f32 %v953, %v969
        %v972 = vpack.c.bf16 %v971, %v971
        %v973 = vld [vmem:[%s4] sm:$0xf]
        %v974 = vld [vmem:[%s4 + $0x4] sm:$0xf]
        %v975 = vld [vmem:[%s4 + $0x8] sm:$0xf]
        %v976 = vld [vmem:[%s4 + $0xc] sm:$0xf]
        %v977 = vld [vmem:[%s5] sm:$0x1]
        %v979 = vlaneseq
        %v980 = vshrl.u32 %v979, 7
        %v981 = vsub.s32 0, %v980
        %v982 = vrot.slane %v977, %v981
        %985 = vrot.lane.b32.xlu0 %v972, 32
        %v986 = vpop.permute.xlu0 %985
        %v991 = vunpack.c.l.b16 %v973
        %v992 = vunpack.c.l.b16 %v974
        %v993 = vunpack.c.l.b16 %v975
        %v994 = vunpack.c.l.b16 %v976
        %v995 = vpack.c.b16 %v992, %v991
        %v996 = vpack.c.b16 %v994, %v993
        %v1000 = vsel %vm467, %v986, 0
        %1002 = vmatprep.subr.bf16.mxu0 0
        %1003 = vmatpush1.bf16.msra.mxu0 %v995
        %1004 = vmatprep.subr.bf16.mxu0 0
        %1005 = vmatpush1.bf16.msra.mxu0 %v996
        %1006 = vmatprep.subr.bf16.mxu0 0
        %1007 = vmatpush1.bf16.msra.mxu0 0
        %1008 = vmatprep.subr.bf16.mxu0 0
        %1009 = vmatpush1.bf16.msra.mxu0 0
        %1010 = vmatprep.subr.bf16.mxu0 0
        %1011 = vmatpush1.bf16.msra.mxu0 0
        %1012 = vmatprep.subr.bf16.mxu0 0
        %1013 = vmatpush1.bf16.msra.mxu0 0
        %1014 = vmatprep.subr.bf16.mxu0 0
        %1015 = vmatpush1.bf16.msra.mxu0 0
        %1016 = vmatprep.subr.bf16.mxu0 0
        %1017 = vmatpush1.bf16.msra.mxu0 0
        %1018 = vmatprep.subr.bf16.mxu0 0
        %1019 = vmatpush1.bf16.msra.mxu0 0
        %1020 = vmatprep.subr.bf16.mxu0 0
        %1021 = vmatpush1.bf16.msra.mxu0 0
        %1022 = vmatprep.subr.bf16.mxu0 0
        %1023 = vmatpush1.bf16.msra.mxu0 0
        %1024 = vmatprep.subr.bf16.mxu0 0
        %1025 = vmatpush1.bf16.msra.mxu0 0
        %1026 = vmatprep.subr.bf16.mxu0 0
        %1027 = vmatpush1.bf16.msra.mxu0 0
        %1028 = vmatprep.subr.bf16.mxu0 0
        %1029 = vmatpush1.bf16.msra.mxu0 0
        %1030 = vmatprep.subr.bf16.mxu0 0
        %1031 = vmatpush1.bf16.msra.mxu0 0
        %1032 = vmatprep.subr.bf16.mxu0 0
        %1033 = vmatpush1.bf16.msra.mxu0 0
        %1034 = vmatprep.mubr.bf16.mxu0 0
        %1035 = vmatmul.mubr.bf16.gmra.mrb[0].mxu0 %v1000
        %v1036 = vpop.f32.mrb[0].mxu0
        %v1037 = vadd.f32 %v982, %v1036
        %v1038 = vpop.f32.mrb[0].mxu0
        %v1039 = vpop.f32.mrb[0].mxu0
        %v1040 = vpop.f32.mrb[0].mxu0
        %1041 = vdwg.mxu0
        %v1042 = vmax.f32 %v1037, 0.0
        %v1043 = vld [vmem:[%s6] sm:$0x1]
        %v1045 = vlaneseq
        %v1046 = vshrl.u32 %v1045, 7
        %v1047 = vsub.s32 0, %v1046
        %v1048 = vrot.slane %v1043, %v1047
        %v1050 = vmul.f32 %v1042, %v1048
        %v1051 = vsel %vm467, %v1050, 0.0
        %1052 = vadd.xlane.f32.xlu0 %v1051
        %v1053 = vpop.xlane.xlu0 %1052
        %s1054 = sld [smem:[#allocation2]]
        %v1055 = vstv %s1054
        %v1056 = vadd.f32 %v1053, %v1055
        %1058 = vrot.lane.b32.xlu0 %v971, 32
        %v1059 = vpop.permute.xlu0 %1058
        %v1061 = vsel %vm467, %v1059, %v1056
        %1062 = vst [vmem:[%s300] sm:$0xff] %v1061
        %s1063 = sand.u32 %s204, 1
        %s1064 = scalar_lea.sflag [#allocation4], %s1063
        %s1065 = sand.u32 %s204, 1
        %s1066 = smul.addr %s1065, 8
        %s1067 = scalar_lea.vmem [#allocation3], %s1066
        // Predicated region
        $region53: #{tpu_custom_call.1} parent=51 // pred_check
          %p1068 = pneg %p214
        $region54: #{tpu_custom_call.1} parent=51 // pred_check_branch
          %1070 = sbr.rel (%p1068) target = $region56
        $region55: #{tpu_custom_call.1} parent=51 // pred_region
          %s1072 = ssub.s32 128, 128
          %1073 = vsyncadd %s1064, %s1072
          %s1074 = smul.addr %s23, 128
          %s1075 = scalar_lea.hbm %s8, %s1074
          %s1077 = sshll.u32 %s1067, 4
          %s1078 = int_to_ptr.vmem [resolvable:$true] %s1077
          %1080 = dma.vmem_to_hbm [thread:$0]  %s1078, 128, %s1075, %s1064
        $region56: #{tpu_custom_call.1} parent=51 // pred_fallthru
          _
      $region52: #{tpu_custom_call.1} parent=5 // pred_fallthru
        _
      %p1081 = scmp.le.s32.totalorder 2, %s18
      // Predicated region
      $region57: #{tpu_custom_call.1} parent=5 // pred_check
        %p1082 = pneg %p1081
      $region58: #{tpu_custom_call.1} parent=5 // pred_check_branch
        %1084 = sbr.rel (%p1082) target = $region60
      $region59: #{tpu_custom_call.1} parent=5 // pred_region
        %s1085 = ssub.s32 %s18, 2
        // Predicated region
        $region61: #{tpu_custom_call.1} parent=59 // pred_check
          %p1086 = pneg %p220
        $region62: #{tpu_custom_call.1} parent=59 // pred_check_branch
          %1088 = sbr.rel (%p1086) target = $region64
        $region63: #{tpu_custom_call.1} parent=59 // pred_region
          %s1089 = sand.u32 %s205, 1
          %s1090 = scalar_lea.sflag [#allocation4], %s1089
          %s1091 = sand.u32 %s205, 1
          %s1092 = smul.addr %s1091, 8
          %s1093 = scalar_lea.vmem [#allocation3], %s1092
          %1094 = dma.done %s1090, 128
        $region64: #{tpu_custom_call.1} parent=59 // pred_fallthru
          _
      $region60: #{tpu_custom_call.1} parent=5 // pred_fallthru
        _
    $region6: #{tpu_custom_call.1} parent=1 // loop_footer
      %s22 = sadd.s32 1, %s18
    $region7: #{tpu_custom_call.1} parent=1 // loop_footer_branch
      %17 = sbr.rel target = $region3
    $region8: #{tpu_custom_call.1} parent=1 // loop_exit
      _
    %1095 = vsyncpa [#allocation4], 1
    %s1096 = scalar_lea.sflag [#allocation4], 1
    %1097 = vsyncpa %s1096, 1

</llo_original>
